<compile_context>
chip_gen: v7x
topology: tpu7x:2x2x1
jax: 0.10.0
libtpu: 0.0.40
codegen_flags: <defaults>
</compile_context>

<pallas_src>
import math

import jax
import jax.numpy as jnp
from jax import lax
from jax.experimental import pallas as pl
from jax.experimental.pallas import tpu as pltpu


def _chip_info():
    """Returns (num_tensorcores, vmem_limit_bytes) for the attached TPU generation."""
    kind = ""
    try:
        kind = jax.devices()[0].device_kind.lower()
    except Exception:
        pass
    if "7" in kind:                                  # v7x: 2 TCs, 64 MiB VMEM / TC
        return 2, 40 * 1024 * 1024
    if "v5 lite" in kind or "v5e" in kind or "v6" in kind:
        return 1, 80 * 1024 * 1024                   # v5e / v6e: 1 TC, 128 MiB VMEM
    return 1, 48 * 1024 * 1024                       # unknown: conservative


def _pick_b_tile(B, D, num_tc, cap=512):
    """Batch tile.  Must tile B exactly (no partial batch blocks -> no garbage
    columns in the flattened-K contraction) and keep K blocks lane-dense."""
    def legal(d):
        return d == B or (d % 8 == 0 and (d * D) % 128 == 0)

    divisors = [d for d in range(min(B, cap), 0, -1) if B % d == 0 and legal(d)]
    if num_tc > 1:
        # Feed both TensorCores on v7x when the batch splits cleanly.
        # TODO(synk): for tiny batches (e.g. B=2) split the T reduction across the
        # two TensorCores with a partial-(m,l,acc) combine instead of idling one.
        for d in divisors:
            if d < B:
                return d
    return divisors[0] if divisors else B


def _pick_t_tile(T, b_tile, D, V, itemsize, vmem_limit):
    """Largest lane-dense sequence tile (<= 1024) that fits the VMEM budget."""
    budget = int(vmem_limit * 0.7)
    fixed = (3 * b_tile * D * b_tile * 4        # block-diagonal Q scratch (+ temps)
             + b_tile * V * 4                   # f32 lincomb accumulator
             + 2 * b_tile * D * itemsize        # double-buffered query block
             + (1 << 20))                       # misc headroom
    per_t = b_tile * ((D + V) * itemsize * 2    # double-buffered K / V tiles
                      + 4 * 2)                  # double-buffered f32 energy tile
    fit = (budget - fixed) // per_t
    t_cap = max(128, min(1024, (fit // 128) * 128))
    return T if T <= t_cap else t_cap


def _make_attention_kernel(T, D, V, b_tile, t_tile, grid_t, scale, mask_tail):
    """Kernel specialized for static shapes / tiling."""

    def kernel(q_ref, k_ref, v_ref,
               energy_ref, msnap_ref, lsum_ref, out_ref,
               qbd_ref, m_ref, l_ref, acc_ref):
        # q_ref:      (b_tile, D)
        # k_ref:      (t_tile, b_tile*D)   flattened seq-first keys, straight from HBM
        # v_ref:      (t_tile, b_tile, V)
        # energy_ref: (b_tile, t_tile)     streamed per tile (f32)
        # msnap_ref:  (b_tile, grid_t)     running-max snapshots (resident, tiny)
        # lsum_ref:   (b_tile, 1)          softmax denominator (resident)
        # out_ref:    (b_tile, V)          linear combination (resident)
        # qbd_ref:    (b_tile*D, b_tile)   block-diagonal Q for the MXU score path
        # m/l/acc:    online-softmax running state (f32), laid out (1,b)/(1,b)/(b,V)
        tj = pl.program_id(1)

        @pl.when(tj == 0)
        def _init():
            # Block-diagonal Q:  qbd[b*D + d, b'] = q[b, d] if b == b' else 0.
            # Built once per batch block; D is assumed to be a multiple of 8
            # (true for typical hidden sizes) so the collapse-reshape is cheap.
            q32 = q_ref[...].astype(jnp.float32)                       # (b, D)
            bi = lax.broadcasted_iota(jnp.int32, (b_tile, D, b_tile), 0)
            bj = lax.broadcasted_iota(jnp.int32, (b_tile, D, b_tile), 2)
            qbd3 = jnp.where(bi == bj, q32[:, :, None], 0.0)           # (b, D, b')
            qbd_ref[...] = qbd3.reshape(b_tile * D, b_tile)
            m_ref[...] = jnp.full(m_ref.shape, -jnp.inf, dtype=jnp.float32)
            l_ref[...] = jnp.zeros(l_ref.shape, dtype=jnp.float32)
            acc_ref[...] = jnp.zeros(acc_ref.shape, dtype=jnp.float32)
            msnap_ref[...] = jnp.zeros(msnap_ref.shape, dtype=jnp.float32)

        # ---- scores on the MXU: (t, b*D) @ (b*D, b) -> (t, b) -----------------
        # 1/sqrt(D) is applied after the matmul (same order as the PyTorch module,
        # keeps the MXU operands bit-identical to the inputs).
        s = jnp.dot(k_ref[...].astype(jnp.float32), qbd_ref[...],
                    preferred_element_type=jnp.float32) * scale        # (t, b)
        v = v_ref[...].astype(jnp.float32)                             # (t, b, V)

        if mask_tail:
            # Last T tile may run past the true sequence length: keep garbage rows
            # out of the softmax and out of the linear combination.
            t_idx = tj * t_tile + lax.broadcasted_iota(jnp.int32, (t_tile, 1), 0)
            valid = t_idx < T
            s = jnp.where(valid, s, -jnp.inf)
            v = jnp.where(valid[:, :, None], v, 0.0)

        # ---- online softmax update (state is O(b_tile * (V + 2))) -------------
        m_prev = m_ref[...]                                            # (1, b)
        m_new = jnp.maximum(m_prev, jnp.max(s, axis=0, keepdims=True))
        alpha = jnp.exp(m_prev - m_new)                                # (1, b)
        p = jnp.exp(s - m_new)                                         # (t, b)
        l_ref[...] = alpha * l_ref[...] + jnp.sum(p, axis=0, keepdims=True)
        # acc[b, :] += sum_t p[t, b] * v[t, b, :]   (VPU multiply-reduce)
        acc_ref[...] = alpha.T * acc_ref[...] + jnp.sum(p[:, :, None] * v, axis=0)
        m_ref[...] = m_new

        # ---- stream this tile's un-rescaled probabilities to HBM (f32) --------
        energy_ref[...] = p.T                                          # (b, t), lane-dense
        # snapshot the running max so the wrapper can rescale exactly
        lane = lax.broadcasted_iota(jnp.int32, (b_tile, grid_t), 1)
        msnap_ref[...] = jnp.where(lane == tj, m_new.T, msnap_ref[...])

        @pl.when(tj == grid_t - 1)
        def _finalize():
            inv_l = (1.0 / l_ref[...]).T                               # (b, 1)
            out_ref[...] = (acc_ref[...] * inv_l).astype(out_ref.dtype)
            lsum_ref[...] = l_ref[...].T

    return kernel


def attention(query, keys, values, *, b_tile=None, t_tile=None):
    """query: [B, Q]; keys: [T, B, K] (K == Q); values: [T, B, V].

    Returns (energy [B, 1, T], linear_combination [B, V]) exactly like the
    PyTorch module's forward.
    """
    B, D = query.shape
    T, Bk, Dk = keys.shape
    Tv, Bv, V = values.shape
    assert Bk == B and Bv == B and Tv == T and Dk == D

    scale = 1.0 / math.sqrt(D)
    out_dtype = query.dtype
    itemsize = max(query.dtype.itemsize, keys.dtype.itemsize, values.dtype.itemsize)

    num_tc, vmem_limit = _chip_info()

    if b_tile is None:
        b_tile = _pick_b_tile(B, D, num_tc)
    assert B % b_tile == 0
    assert b_tile == B or (b_tile % 8 == 0 and (b_tile * D) % 128 == 0)

    if t_tile is None:
        t_tile = _pick_t_tile(T, b_tile, D, V, itemsize, vmem_limit)
    t_tile = min(t_tile, T)
    assert t_tile == T or t_tile % 128 == 0

    grid_b = B // b_tile
    grid_t = pl.cdiv(T, t_tile)
    t_cols = grid_t * t_tile
    mask_tail = t_cols != T

    # Free, contiguous reshape: keys consumed as [T, B*D] so each K DMA row is a
    # contiguous b_tile*D*itemsize slab and the score matmul can use the MXU.
    keys_flat = keys.reshape(T, B * D)

    kernel = _make_attention_kernel(T, D, V, b_tile, t_tile, grid_t, scale, mask_tail)

    energy_p, m_snap, l_sum, lincomb = pl.pallas_call(
        kernel,
        out_shape=(
            jax.ShapeDtypeStruct((B, t_cols), jnp.float32),   # p = exp(s - m_running)
            jax.ShapeDtypeStruct((B, grid_t), jnp.float32),   # running-max snapshots
            jax.ShapeDtypeStruct((B, 1), jnp.float32),        # softmax denominator
            jax.ShapeDtypeStruct((B, V), out_dtype),          # linear combination
        ),
        grid_spec=pltpu.PrefetchScalarGridSpec(
            num_scalar_prefetch=0,
            grid=(grid_b, grid_t),
            in_specs=[
                # query: reused for every T tile of this batch block
                pl.BlockSpec((b_tile, D), lambda b, t: (b, 0)),
                # keys (flattened) / values: consumed once, straight from HBM
                pl.BlockSpec((t_tile, b_tile * D), lambda b, t: (t, b)),
                pl.BlockSpec((t_tile, b_tile, V), lambda b, t: (t, b, 0)),
            ],
            out_specs=(
                # energy: streamed per (b, t) tile -> no VMEM residency, no wrapper transpose
                pl.BlockSpec((b_tile, t_tile), lambda b, t: (b, t)),
                pl.BlockSpec((b_tile, grid_t), lambda b, t: (b, 0)),
                pl.BlockSpec((b_tile, 1), lambda b, t: (b, 0)),
                pl.BlockSpec((b_tile, V), lambda b, t: (b, 0)),
            ),
            scratch_shapes=[
                pltpu.VMEM((b_tile * D, b_tile), jnp.float32),   # block-diagonal Q
                pltpu.VMEM((1, b_tile), jnp.float32),            # running max
                pltpu.VMEM((1, b_tile), jnp.float32),            # running denominator
                pltpu.VMEM((b_tile, V), jnp.float32),            # unnormalized lincomb
            ],
        ),
        compiler_params=pltpu.CompilerParams(
            # batch axis parallel (feeds both v7x TensorCores when grid_b >= 2);
            # T is the sequential online-softmax reduction.
            dimension_semantics=("parallel", "arbitrary"),
            vmem_limit_bytes=vmem_limit,
        ),
    )(query, keys_flat, values)

    # Exact O(B*T) elementwise rescale in XLA (no transposes, no layout copies):
    #   energy[b, t in tile j] = p[b, t] * exp(m_j[b] - m_final[b]) / l[b]
    m_fin = m_snap[:, grid_t - 1:]                    # (B, 1): final running max
    corr = jnp.exp(m_snap - m_fin) / l_sum            # (B, grid_t)
    energy = energy_p.reshape(B, grid_t, t_tile) * corr[:, :, None]
    energy = energy.reshape(B, t_cols)
    if mask_tail:
        energy = energy[:, :T]
    return energy.astype(out_dtype)[:, None, :], lincomb


def _reference(query, keys, values):
    B, D = query.shape
    scale = 1.0 / math.sqrt(D)
    hi = jax.lax.Precision.HIGHEST
    k_bf = jnp.transpose(keys, (1, 0, 2))
    v_bf = jnp.transpose(values, (1, 0, 2))
    scores = jnp.einsum("bd,btd->bt", query, k_bf, precision=hi) * scale
    probs = jax.nn.softmax(scores, axis=-1)
    lin = jnp.einsum("bt,btv->bv", probs, v_bf, precision=hi)
    return probs[:, None, :], lin


if __name__ == "__main__":
    root = jax.random.PRNGKey(0)

    # Case 1: tiny shapes implied by the module (batch=2, seq=8, hidden=32).
    # Case 2: whole-batch block, single T tile, V != D.
    # Case 3: forced multi-block grid (2 batch blocks x 3 seq tiles) with a masked tail.
    cases = [
        ((2, 8, 32, 32), {}),
        ((20, 256, 32, 64), {}),
        ((32, 1300, 32, 64), dict(b_tile=16, t_tile=512)),
    ]
    for (B, T, D, V), overrides in cases:
        kq, kk, kv, root = jax.random.split(root, 4)
        # q/k are rounded through bf16 so the MXU score path agrees with the f32
        # reference to f32 rounding regardless of Mosaic's f32-matmul strategy.
        query = jax.random.normal(kq, (B, D), jnp.float32).astype(jnp.bfloat16).astype(jnp.float32)
        keys = jax.random.normal(kk, (T, B, D), jnp.float32).astype(jnp.bfloat16).astype(jnp.float32)
        values = jax.random.normal(kv, (T, B, V), dtype=jnp.float32)

        energy, lincomb = attention(query, keys, values, **overrides)
        jax.block_until_ready((energy, lincomb))

        ref_e, ref_l = _reference(query, keys, values)
        assert energy.shape == (B, 1, T) and lincomb.shape == (B, V)
        assert jnp.allclose(energy, ref_e, atol=2e-5, rtol=2e-5), (B, T, D, V)
        assert jnp.allclose(lincomb, ref_l, atol=2e-5, rtol=2e-5), (B, T, D, V)

    print("KERNEL_OK")
</pallas_src>

<mosaic_0001>
module attributes {stable_mosaic.version = 11 : i64} {
  func.func @kernel(%arg0: i32, %arg1: i32, %arg2: memref<2x32xf32, #tpu.memory_space<vmem>>, %arg3: memref<8x64xf32, #tpu.memory_space<vmem>>, %arg4: memref<8x2x32xf32, #tpu.memory_space<vmem>>, %arg5: memref<2x8xf32, #tpu.memory_space<vmem>>, %arg6: memref<2x1xf32, #tpu.memory_space<vmem>>, %arg7: memref<2x1xf32, #tpu.memory_space<vmem>>, %arg8: memref<2x32xf32, #tpu.memory_space<vmem>>, %arg9: memref<64x2xf32, #tpu.memory_space<vmem>>, %arg10: memref<1x2xf32, #tpu.memory_space<vmem>>, %arg11: memref<1x2xf32, #tpu.memory_space<vmem>>, %arg12: memref<2x32xf32, #tpu.memory_space<vmem>>) attributes {dimension_semantics = [#tpu.dimension_semantics<parallel>, #tpu.dimension_semantics<arbitrary>], iteration_bounds = array<i64: 1, 1>, scalar_prefetch = 0 : i64, scratch_operands = 4 : i64, tpu.core_type = #tpu.core_type<tc>, window_params = [{transform_indices = @transform_0, window_bounds = array<i64: 2, 32>}, {transform_indices = @transform_1, window_bounds = array<i64: 8, 64>}, {transform_indices = @transform_2, window_bounds = array<i64: 8, 2, 32>}, {transform_indices = @transform_3, window_bounds = array<i64: 2, 8>}, {transform_indices = @transform_4, window_bounds = array<i64: 2, 1>}, {transform_indices = @transform_5, window_bounds = array<i64: 2, 1>}, {transform_indices = @transform_6, window_bounds = array<i64: 2, 32>}]} {
    %c0_i32 = arith.constant 0 : i32
    %0 = arith.cmpi eq, %arg1, %c0_i32 : i32
    %1 = arith.extui %0 : i1 to i32
    %c0_i32_0 = arith.constant 0 : i32
    %2 = arith.cmpi ne, %1, %c0_i32_0 : i32
    scf.if %2 {
      %c0_31 = arith.constant 0 : index
      %c0_32 = arith.constant 0 : index
      %47 = vector.load %arg2[%c0_31, %c0_32] : memref<2x32xf32, #tpu.memory_space<vmem>>, vector<2x32xf32>
      %48 = tpu.iota {dimensions = array<i32: 0>} : vector<2x32x2xi32>
      %49 = tpu.iota {dimensions = array<i32: 2>} : vector<2x32x2xi32>
      %50 = arith.cmpi eq, %48, %49 : vector<2x32x2xi32>
      %51 = vector.shape_cast %47 : vector<2x32xf32> to vector<2x32x1xf32>
      %cst_33 = arith.constant 0.000000e+00 : f32
      %52 = vector.shape_cast %51 : vector<2x32x1xf32> to vector<2x32x1xf32>
      %53 = vector.broadcast %52 : vector<2x32x1xf32> to vector<2x32x2xf32>
      %54 = vector.broadcast %cst_33 : f32 to vector<2x32x2xf32>
      %55 = arith.select %50, %53, %54 : vector<2x32x2xi1>, vector<2x32x2xf32>
      %56 = vector.shape_cast %55 : vector<2x32x2xf32> to vector<64x2xf32>
      %c0_34 = arith.constant 0 : index
      %c0_35 = arith.constant 0 : index
      %57 = vector.load %arg9[%c0_34, %c0_35] : memref<64x2xf32, #tpu.memory_space<vmem>>, vector<64x2xf32>
      tpu.vector_store %arg9[%c0_34, %c0_35], %56 {strides = array<i32>} : memref<64x2xf32, #tpu.memory_space<vmem>>, vector<64x2xf32>,
      %cst_36 = arith.constant 0xFF800000 : f32
      %58 = vector.broadcast %cst_36 : f32 to vector<1x2xf32>
      %c0_37 = arith.constant 0 : index
      %c0_38 = arith.constant 0 : index
      %59 = vector.load %arg10[%c0_37, %c0_38] : memref<1x2xf32, #tpu.memory_space<vmem>>, vector<1x2xf32>
      tpu.vector_store %arg10[%c0_37, %c0_38], %58 {strides = array<i32>} : memref<1x2xf32, #tpu.memory_space<vmem>>, vector<1x2xf32>,
      %cst_39 = arith.constant 0.000000e+00 : f32
      %60 = vector.broadcast %cst_39 : f32 to vector<1x2xf32>
      %c0_40 = arith.constant 0 : index
      %c0_41 = arith.constant 0 : index
      %61 = vector.load %arg11[%c0_40, %c0_41] : memref<1x2xf32, #tpu.memory_space<vmem>>, vector<1x2xf32>
      tpu.vector_store %arg11[%c0_40, %c0_41], %60 {strides = array<i32>} : memref<1x2xf32, #tpu.memory_space<vmem>>, vector<1x2xf32>,
      %cst_42 = arith.constant 0.000000e+00 : f32
      %62 = vector.broadcast %cst_42 : f32 to vector<2x32xf32>
      %c0_43 = arith.constant 0 : index
      %c0_44 = arith.constant 0 : index
      %63 = vector.load %arg12[%c0_43, %c0_44] : memref<2x32xf32, #tpu.memory_space<vmem>>, vector<2x32xf32>
      tpu.vector_store %arg12[%c0_43, %c0_44], %62 {strides = array<i32>} : memref<2x32xf32, #tpu.memory_space<vmem>>, vector<2x32xf32>,
      %cst_45 = arith.constant 0.000000e+00 : f32
      %64 = vector.broadcast %cst_45 : f32 to vector<2x1xf32>
      %c0_46 = arith.constant 0 : index
      %c0_47 = arith.constant 0 : index
      %65 = vector.load %arg6[%c0_46, %c0_47] : memref<2x1xf32, #tpu.memory_space<vmem>>, vector<2x1xf32>
      tpu.vector_store %arg6[%c0_46, %c0_47], %64 {strides = array<i32>} : memref<2x1xf32, #tpu.memory_space<vmem>>, vector<2x1xf32>,
    } else {
    }
    %c0 = arith.constant 0 : index
    %c0_1 = arith.constant 0 : index
    %3 = vector.load %arg3[%c0, %c0_1] : memref<8x64xf32, #tpu.memory_space<vmem>>, vector<8x64xf32>
    %c0_2 = arith.constant 0 : index
    %c0_3 = arith.constant 0 : index
    %4 = vector.load %arg9[%c0_2, %c0_3] : memref<64x2xf32, #tpu.memory_space<vmem>>, vector<64x2xf32>
    %cst = arith.constant dense<0.000000e+00> : vector<8x2xf32>
    %5 = tpu.matmul %3, %4, %cst {dimension_numbers = #tpu.dot_dimension_numbers<[1], [0], [0], [1], [0, 0, 1, 1], [], []>} : vector<8x64xf32>, vector<64x2xf32>, vector<8x2xf32> -> vector<8x2xf32>
    %cst_4 = arith.constant 0.176776692 : f32
    %6 = vector.broadcast %cst_4 : f32 to vector<8x2xf32>
    %7 = arith.mulf %5, %6 : vector<8x2xf32>
    %c0_5 = arith.constant 0 : index
    %c0_6 = arith.constant 0 : index
    %c0_7 = arith.constant 0 : index
    %8 = vector.load %arg4[%c0_5, %c0_6, %c0_7] : memref<8x2x32xf32, #tpu.memory_space<vmem>>, vector<8x2x32xf32>
    %c0_8 = arith.constant 0 : index
    %c0_9 = arith.constant 0 : index
    %9 = vector.load %arg10[%c0_8, %c0_9] : memref<1x2xf32, #tpu.memory_space<vmem>>, vector<1x2xf32>
    %cst_10 = arith.constant dense<0xFF800000> : vector<2xf32>
    %10 = vector.multi_reduction <maximumf>, %7, %cst_10 [0] : vector<8x2xf32> to vector<2xf32>
    %11 = vector.shape_cast %10 : vector<2xf32> to vector<1x2xf32>
    %12 = arith.maximumf %9, %11 : vector<1x2xf32>
    %13 = arith.subf %9, %12 : vector<1x2xf32>
    %14 = math.exp %13 : vector<1x2xf32>
    %15 = vector.broadcast %12 : vector<1x2xf32> to vector<8x2xf32>
    %16 = arith.subf %7, %15 : vector<8x2xf32>
    %17 = math.exp %16 : vector<8x2xf32>
    %c0_11 = arith.constant 0 : index
    %c0_12 = arith.constant 0 : index
    %18 = vector.load %arg11[%c0_11, %c0_12] : memref<1x2xf32, #tpu.memory_space<vmem>>, vector<1x2xf32>
    %19 = arith.mulf %14, %18 : vector<1x2xf32>
    %cst_13 = arith.constant dense<0.000000e+00> : vector<2xf32>
    %20 = vector.multi_reduction <add>, %17, %cst_13 [0] : vector<8x2xf32> to vector<2xf32>
    %21 = vector.shape_cast %20 : vector<2xf32> to vector<1x2xf32>
    %22 = arith.addf %19, %21 : vector<1x2xf32>
    %c0_14 = arith.constant 0 : index
    %c0_15 = arith.constant 0 : index
    %23 = vector.load %arg11[%c0_14, %c0_15] : memref<1x2xf32, #tpu.memory_space<vmem>>, vector<1x2xf32>
    tpu.vector_store %arg11[%c0_14, %c0_15], %22 {strides = array<i32>} : memref<1x2xf32, #tpu.memory_space<vmem>>, vector<1x2xf32>,
    %24 = tpu.transpose %14, [1, 0] : vector<1x2xf32> -> vector<2x1xf32>
    %c0_16 = arith.constant 0 : index
    %c0_17 = arith.constant 0 : index
    %25 = vector.load %arg12[%c0_16, %c0_17] : memref<2x32xf32, #tpu.memory_space<vmem>>, vector<2x32xf32>
    %26 = vector.broadcast %24 : vector<2x1xf32> to vector<2x32xf32>
    %27 = arith.mulf %26, %25 : vector<2x32xf32>
    %28 = vector.shape_cast %17 : vector<8x2xf32> to vector<8x2x1xf32>
    %29 = vector.broadcast %28 : vector<8x2x1xf32> to vector<8x2x32xf32>
    %30 = arith.mulf %29, %8 : vector<8x2x32xf32>
    %cst_18 = arith.constant dense<0.000000e+00> : vector<2x32xf32>
    %31 = vector.multi_reduction <add>, %30, %cst_18 [0] : vector<8x2x32xf32> to vector<2x32xf32>
    %32 = arith.addf %27, %31 : vector<2x32xf32>
    %c0_19 = arith.constant 0 : index
    %c0_20 = arith.constant 0 : index
    %33 = vector.load %arg12[%c0_19, %c0_20] : memref<2x32xf32, #tpu.memory_space<vmem>>, vector<2x32xf32>
    tpu.vector_store %arg12[%c0_19, %c0_20], %32 {strides = array<i32>} : memref<2x32xf32, #tpu.memory_space<vmem>>, vector<2x32xf32>,
    %c0_21 = arith.constant 0 : index
    %c0_22 = arith.constant 0 : index
    %34 = vector.load %arg10[%c0_21, %c0_22] : memref<1x2xf32, #tpu.memory_space<vmem>>, vector<1x2xf32>
    tpu.vector_store %arg10[%c0_21, %c0_22], %12 {strides = array<i32>} : memref<1x2xf32, #tpu.memory_space<vmem>>, vector<1x2xf32>,
    %35 = tpu.transpose %17, [1, 0] : vector<8x2xf32> -> vector<2x8xf32>
    %c0_23 = arith.constant 0 : index
    %c0_24 = arith.constant 0 : index
    %36 = vector.load %arg5[%c0_23, %c0_24] : memref<2x8xf32, #tpu.memory_space<vmem>>, vector<2x8xf32>
    tpu.vector_store %arg5[%c0_23, %c0_24], %35 {strides = array<i32>} : memref<2x8xf32, #tpu.memory_space<vmem>>, vector<2x8xf32>,
    %37 = tpu.iota {dimensions = array<i32: 1>} : vector<2x1xi32>
    %38 = vector.broadcast %arg1 : i32 to vector<2x1xi32>
    %39 = arith.cmpi eq, %37, %38 : vector<2x1xi32>
    %40 = tpu.transpose %12, [1, 0] : vector<1x2xf32> -> vector<2x1xf32>
    %c0_25 = arith.constant 0 : index
    %c0_26 = arith.constant 0 : index
    %41 = vector.load %arg6[%c0_25, %c0_26] : memref<2x1xf32, #tpu.memory_space<vmem>>, vector<2x1xf32>
    %42 = arith.select %39, %40, %41 : vector<2x1xi1>, vector<2x1xf32>
    %c0_27 = arith.constant 0 : index
    %c0_28 = arith.constant 0 : index
    %43 = vector.load %arg6[%c0_27, %c0_28] : memref<2x1xf32, #tpu.memory_space<vmem>>, vector<2x1xf32>
    tpu.vector_store %arg6[%c0_27, %c0_28], %42 {strides = array<i32>} : memref<2x1xf32, #tpu.memory_space<vmem>>, vector<2x1xf32>,
    %c0_i32_29 = arith.constant 0 : i32
    %44 = arith.cmpi eq, %arg1, %c0_i32_29 : i32
    %45 = arith.extui %44 : i1 to i32
    %c0_i32_30 = arith.constant 0 : i32
    %46 = arith.cmpi ne, %45, %c0_i32_30 : i32
    scf.if %46 {
      %c0_31 = arith.constant 0 : index
      %c0_32 = arith.constant 0 : index
      %47 = vector.load %arg11[%c0_31, %c0_32] : memref<1x2xf32, #tpu.memory_space<vmem>>, vector<1x2xf32>
      %cst_33 = arith.constant 1.000000e+00 : f32
      %48 = vector.broadcast %cst_33 : f32 to vector<1x2xf32>
      %49 = arith.divf %48, %47 : vector<1x2xf32>
      %50 = tpu.transpose %49, [1, 0] : vector<1x2xf32> -> vector<2x1xf32>
      %c0_34 = arith.constant 0 : index
      %c0_35 = arith.constant 0 : index
      %51 = vector.load %arg12[%c0_34, %c0_35] : memref<2x32xf32, #tpu.memory_space<vmem>>, vector<2x32xf32>
      %52 = vector.broadcast %50 : vector<2x1xf32> to vector<2x32xf32>
      %53 = arith.mulf %51, %52 : vector<2x32xf32>
      %c0_36 = arith.constant 0 : index
      %c0_37 = arith.constant 0 : index
      %54 = vector.load %arg8[%c0_36, %c0_37] : memref<2x32xf32, #tpu.memory_space<vmem>>, vector<2x32xf32>
      tpu.vector_store %arg8[%c0_36, %c0_37], %53 {strides = array<i32>} : memref<2x32xf32, #tpu.memory_space<vmem>>, vector<2x32xf32>,
      %c0_38 = arith.constant 0 : index
      %c0_39 = arith.constant 0 : index
      %55 = vector.load %arg11[%c0_38, %c0_39] : memref<1x2xf32, #tpu.memory_space<vmem>>, vector<1x2xf32>
      %56 = tpu.transpose %55, [1, 0] : vector<1x2xf32> -> vector<2x1xf32>
      %c0_40 = arith.constant 0 : index
      %c0_41 = arith.constant 0 : index
      %57 = vector.load %arg7[%c0_40, %c0_41] : memref<2x1xf32, #tpu.memory_space<vmem>>, vector<2x1xf32>
      tpu.vector_store %arg7[%c0_40, %c0_41], %56 {strides = array<i32>} : memref<2x1xf32, #tpu.memory_space<vmem>>, vector<2x1xf32>,
    } else {
    }
    return
  }
  func.func @transform_0(%arg0: i32, %arg1: i32) -> (i32, i32) {
    %c0_i32 = arith.constant 0 : i32
    %c0_i32_0 = arith.constant 0 : i32
    return %arg0, %c0_i32 : i32, i32
  }
  func.func @transform_1(%arg0: i32, %arg1: i32) -> (i32, i32) {
    %c0_i32 = arith.constant 0 : i32
    return %arg1, %arg0 : i32, i32
  }
  func.func @transform_2(%arg0: i32, %arg1: i32) -> (i32, i32, i32) {
    %c0_i32 = arith.constant 0 : i32
    %c0_i32_0 = arith.constant 0 : i32
    return %arg1, %arg0, %c0_i32 : i32, i32, i32
  }
  func.func @transform_3(%arg0: i32, %arg1: i32) -> (i32, i32) {
    %c0_i32 = arith.constant 0 : i32
    return %arg0, %arg1 : i32, i32
  }
  func.func @transform_4(%arg0: i32, %arg1: i32) -> (i32, i32) {
    %c0_i32 = arith.constant 0 : i32
    %c0_i32_0 = arith.constant 0 : i32
    return %arg0, %c0_i32 : i32, i32
  }
  func.func @transform_5(%arg0: i32, %arg1: i32) -> (i32, i32) {
    %c0_i32 = arith.constant 0 : i32
    %c0_i32_0 = arith.constant 0 : i32
    return %arg0, %c0_i32 : i32, i32
  }
  func.func @transform_6(%arg0: i32, %arg1: i32) -> (i32, i32) {
    %c0_i32 = arith.constant 0 : i32
    %c0_i32_0 = arith.constant 0 : i32
    return %arg0, %c0_i32 : i32, i32
  }
}

</mosaic_0001>

<llo_original>
// kernel: tpu_custom_call.1
$region0: #{tpu_custom_call.1}
  #allocation0 [shape = 'u32[]', space=smem, size = 0x4, offset = 0x4, fixed_abs, tag = 'smem constant byte address 0x4 - core index']
  #allocation1 [shape = 'u32[144,128]{1,0:T(1,128)}', space=vmem, size = 0x12000, scoped, tag = 'internal scratch']
  #allocation2 [shape = 'f32[64,2]{1,0:T(8,128)}', space=vmem, size = 0x8000, scoped, tag = 'scratch operand']
  #allocation3 [shape = 'f32[1,2]{1,0:T(1,128)}', space=vmem, size = 0x200, scoped, tag = 'scratch operand']
  #allocation4 [shape = 'f32[1,2]{1,0:T(1,128)}', space=vmem, size = 0x200, scoped, tag = 'scratch operand']
  #allocation5 [shape = 'f32[2,32]{1,0:T(2,128)}', space=vmem, size = 0x400, scoped, tag = 'scratch operand']
  %s0 = inlined_call_operand.hbm [shape: f32[2,32], index: 0, kind: input, shape index: {}]
  %s1 = inlined_call_operand.hbm [shape: f32[8,64], index: 1, kind: input, shape index: {}]
  %s2 = inlined_call_operand.hbm [shape: f32[8,2,32], index: 2, kind: input, shape index: {}]
  %s3 = inlined_call_operand.hbm [shape: f32[2,8], index: 3, kind: output, shape index: {0}]
  %s4 = inlined_call_operand.vmem [shape: f32[2,1], index: 4, kind: output, shape index: {1}]
  %s5 = inlined_call_operand.vmem [shape: f32[2,1], index: 5, kind: output, shape index: {2}]
  %s6 = inlined_call_operand.hbm [shape: f32[2,32], index: 6, kind: output, shape index: {3}]
  %7 = xla_tuple %s3, %s4, %s5, %s6
  %s8 = sld [smem:[#allocation0]]
  $region66: #{tpu_custom_call.1} parent=0
    _
  %s10 = ssub.s32 1, %s8
  %s11 = scalar_select 0, %s10, %s8
  $region1: #{tpu_custom_call.1} parent=0
    #allocation6 [shape = 'u8[1024]{0}', space=vmem, size = 0x400, scoped, tag = 'input window, operand 0, single buffered']
    #allocation7 [shape = 's32[1]{0}', space=sflag, size = 0x4, scoped, tag = 'scoped memory for tpu_custom_call.1']
    #allocation8 [shape = 's32[1]{0}', space=sflag, size = 0x4, scoped, tag = 'scoped memory for tpu_custom_call.1']
    #allocation9 [shape = 'u8[4096]{0}', space=vmem, size = 0x1000, scoped, tag = 'input window, operand 1, single buffered']
    #allocation10 [shape = 's32[1]{0}', space=sflag, size = 0x4, scoped, tag = 'scoped memory for tpu_custom_call.1']
    #allocation11 [shape = 'u8[8192]{0}', space=vmem, size = 0x2000, scoped, tag = 'input window, operand 2, single buffered']
    #allocation12 [shape = 'u8[1024]{0}', space=vmem, size = 0x400, scoped, tag = 'output window, operand 0, single buffered']
    #allocation13 [shape = 'u8[1024]{0}', space=vmem, size = 0x400, scoped, tag = 'output window, operand 3, single buffered']
    #allocation14 [shape = 's32[1]{0}', space=sflag, size = 0x4, scoped, tag = 'scoped memory for tpu_custom_call.1']
    %12 = vsyncpa [#allocation7], 0
    %13 = vsyncpa [#allocation10], 0
    %14 = vsyncpa [#allocation8], 0
    %15 = vsyncpa [#allocation14], 0
    // Predicated region
    $region2: #{tpu_custom_call.1} parent=1 // pred_check
      _
    $region3: #{tpu_custom_call.1} parent=1 // pred_check_branch
      %17 = sbr.rel (0) target = $region5
    $region4: #{tpu_custom_call.1} parent=1 // pred_region
      %s19 = ssub.s32 32, 32
      %20 = vsyncadd [#allocation7], %s19
      %s22 = sshll.u32 [#allocation6], 4
      %s23 = int_to_ptr.vmem [resolvable:$true] %s22
      %25 = dma.hbm_to_vmem [thread:$0]  %s0, 32, %s23, [#allocation7]
    $region5: #{tpu_custom_call.1} parent=1 // pred_fallthru
      _
    // Predicated region
    $region6: #{tpu_custom_call.1} parent=1 // pred_check
      _
    $region7: #{tpu_custom_call.1} parent=1 // pred_check_branch
      %27 = sbr.rel (0) target = $region9
    $region8: #{tpu_custom_call.1} parent=1 // pred_region
      %s29 = ssub.s32 128, 128
      %30 = vsyncadd [#allocation10], %s29
      %s32 = sshll.u32 [#allocation9], 4
      %s33 = int_to_ptr.vmem [resolvable:$true] %s32
      %35 = dma.hbm_to_vmem [thread:$0]  %s1, 128, %s33, [#allocation10]
    $region9: #{tpu_custom_call.1} parent=1 // pred_fallthru
      _
    // Predicated region
    $region10: #{tpu_custom_call.1} parent=1 // pred_check
      _
    $region11: #{tpu_custom_call.1} parent=1 // pred_check_branch
      %37 = sbr.rel (0) target = $region13
    $region12: #{tpu_custom_call.1} parent=1 // pred_region
      %s39 = ssub.s32 256, 256
      %40 = vsyncadd [#allocation10], %s39
      %s41 = sshll.u32 [#allocation11], 4
      %s42 = int_to_ptr.vmem [resolvable:$true] %s41
      %47 = dma.hbm_to_vmem [thread:$0]  %s2, 256, %s42, [#allocation10], 32, 32, 2
    $region13: #{tpu_custom_call.1} parent=1 // pred_fallthru
      _
    // Predicated region
    $region14: #{tpu_custom_call.1} parent=1 // pred_check
      _
    $region15: #{tpu_custom_call.1} parent=1 // pred_check_branch
      %49 = sbr.rel (0) target = $region17
    $region16: #{tpu_custom_call.1} parent=1 // pred_region
      %50 = dma.done [#allocation7], 32
    $region17: #{tpu_custom_call.1} parent=1 // pred_fallthru
      _
    // Predicated region
    $region18: #{tpu_custom_call.1} parent=1 // pred_check
      _
    $region19: #{tpu_custom_call.1} parent=1 // pred_check_branch
      %52 = sbr.rel (0) target = $region21
    $region20: #{tpu_custom_call.1} parent=1 // pred_region
      %53 = dma.done [#allocation10], 128
    $region21: #{tpu_custom_call.1} parent=1 // pred_fallthru
      _
    // Predicated region
    $region22: #{tpu_custom_call.1} parent=1 // pred_check
      _
    $region23: #{tpu_custom_call.1} parent=1 // pred_check_branch
      %55 = sbr.rel (0) target = $region25
    $region24: #{tpu_custom_call.1} parent=1 // pred_region
      %56 = dma.done [#allocation10], 256
    $region25: #{tpu_custom_call.1} parent=1 // pred_fallthru
      _
    %p57 = scmp.eq.s32.totalorder 0, 0
    // Predicated region
    $region26: #{tpu_custom_call.1} parent=1 // pred_check
      %p58 = pneg %p57
    $region27: #{tpu_custom_call.1} parent=1 // pred_check_branch
      %60 = sbr.rel (%p58) target = $region29
    $region28: #{tpu_custom_call.1} parent=1 // pred_region
      %v61 = vld [vmem:[#allocation6] sm:$0x3]
      %v62 = vlaneseq
      %v63 = vand.u32 %v62, 127
      %vm64 = vcmp.eq.s32.totalorder %v63, 0
      %vm65 = vcmp.eq.s32.totalorder %v63, 1
      %v66 = vlaneseq
      %v67 = vshrl.u32 %v66, 7
      %v68 = vsub.s32 0, %v67
      %v69 = vrot.slane %v61, %v68
      %71 = vbcast.lane.b32.xlu0 %v69, 256
      %v72 = vpop.permute.xlu0 %71
      %s74 = sor.u32 256, 8
      %75 = vbcast.lane.b32.xlu0 %v69, %s74
      %v76 = vpop.permute.xlu0 %75
      %s78 = sor.u32 256, 16
      %79 = vbcast.lane.b32.xlu0 %v69, %s78
      %v80 = vpop.permute.xlu0 %79
      %s82 = sor.u32 256, 24
      %83 = vbcast.lane.b32.xlu0 %v69, %s82
      %v84 = vpop.permute.xlu0 %83
      %v85 = vlaneseq
      %v86 = vshrl.u32 %v85, 7
      %v87 = vsub.s32 1, %v86
      %v88 = vrot.slane %v61, %v87
      %90 = vbcast.lane.b32.xlu0 %v88, 256
      %v91 = vpop.permute.xlu0 %90
      %s93 = sor.u32 256, 8
      %94 = vbcast.lane.b32.xlu0 %v88, %s93
      %v95 = vpop.permute.xlu0 %94
      %s97 = sor.u32 256, 16
      %98 = vbcast.lane.b32.xlu0 %v88, %s97
      %v99 = vpop.permute.xlu0 %98
      %s101 = sor.u32 256, 24
      %102 = vbcast.lane.b32.xlu0 %v88, %s101
      %v103 = vpop.permute.xlu0 %102
      %v104 = vsel %vm64, %v72, 0.0
      %v105 = vsel %vm64, %v76, 0.0
      %v106 = vsel %vm64, %v80, 0.0
      %v107 = vsel %vm64, %v84, 0.0
      %v108 = vsel %vm65, %v91, 0.0
      %v109 = vsel %vm65, %v95, 0.0
      %v110 = vsel %vm65, %v99, 0.0
      %v111 = vsel %vm65, %v103, 0.0
      %vm112 = vcmask 15360
      %113 = vst.msk [vmem:[#allocation2] sm:$0xff] %vm112, %v104
      %114 = vst.msk [vmem:[#allocation2 + $0x8] sm:$0xff] %vm112, %v105
      %115 = vst.msk [vmem:[#allocation2 + $0x10] sm:$0xff] %vm112, %v106
      %116 = vst.msk [vmem:[#allocation2 + $0x18] sm:$0xff] %vm112, %v107
      %117 = vst.msk [vmem:[#allocation2 + $0x20] sm:$0xff] %vm112, %v108
      %118 = vst.msk [vmem:[#allocation2 + $0x28] sm:$0xff] %vm112, %v109
      %119 = vst.msk [vmem:[#allocation2 + $0x30] sm:$0xff] %vm112, %v110
      %120 = vst.msk [vmem:[#allocation2 + $0x38] sm:$0xff] %vm112, %v111
      %vm121 = vcmask 8192
      %122 = vst.msk [vmem:[#allocation3] sm:$0x1] %vm121, -inf
      %123 = vst.msk [vmem:[#allocation4] sm:$0x1] %vm121, 0.0
      %vm124 = vcmask 254976
      %125 = vst.msk [vmem:[#allocation5] sm:$0x3] %vm124, 0.0
      %vm126 = vcmask 1024
      %127 = vst.msk [vmem:[%s4] sm:$0x3] %vm126, 0.0
    $region29: #{tpu_custom_call.1} parent=1 // pred_fallthru
      _
    %v128 = vld [vmem:[#allocation9] sm:$0xff]
    %v129 = vld [vmem:[#allocation2] sm:$0xff]
    %v130 = vld [vmem:[#allocation2 + $0x8] sm:$0xff]
    %v131 = vld [vmem:[#allocation2 + $0x10] sm:$0xff]
    %v132 = vld [vmem:[#allocation2 + $0x18] sm:$0xff]
    %v133 = vld [vmem:[#allocation2 + $0x20] sm:$0xff]
    %v134 = vld [vmem:[#allocation2 + $0x28] sm:$0xff]
    %v135 = vld [vmem:[#allocation2 + $0x30] sm:$0xff]
    %v136 = vld [vmem:[#allocation2 + $0x38] sm:$0xff]
    %vm137 = vcmask 523264
    %v139 = vsel %vm137, %v128, 0
    %141 = vmatprep.subr.mxu0 0.0
    %142 = vmatpush1.msra.mxu0 %v129
    %143 = vmatprep.subr.mxu0 0.0
    %144 = vmatpush1.msra.mxu0 %v130
    %145 = vmatprep.subr.mxu0 0.0
    %146 = vmatpush1.msra.mxu0 %v131
    %147 = vmatprep.subr.mxu0 0.0
    %148 = vmatpush1.msra.mxu0 %v132
    %149 = vmatprep.subr.mxu0 0.0
    %150 = vmatpush1.msra.mxu0 %v133
    %151 = vmatprep.subr.mxu0 0.0
    %152 = vmatpush1.msra.mxu0 %v134
    %153 = vmatprep.subr.mxu0 0.0
    %154 = vmatpush1.msra.mxu0 %v135
    %155 = vmatprep.subr.mxu0 0.0
    %156 = vmatpush1.msra.mxu0 %v136
    %157 = vmatprep.subr.mxu0 0.0
    %158 = vmatpush1.msra.mxu0 0.0
    %159 = vmatprep.subr.mxu0 0.0
    %160 = vmatpush1.msra.mxu0 0.0
    %161 = vmatprep.subr.mxu0 0.0
    %162 = vmatpush1.msra.mxu0 0.0
    %163 = vmatprep.subr.mxu0 0.0
    %164 = vmatpush1.msra.mxu0 0.0
    %165 = vmatprep.subr.mxu0 0.0
    %166 = vmatpush1.msra.mxu0 0.0
    %167 = vmatprep.subr.mxu0 0.0
    %168 = vmatpush1.msra.mxu0 0.0
    %169 = vmatprep.subr.mxu0 0.0
    %170 = vmatpush1.msra.mxu0 0.0
    %171 = vmatprep.subr.mxu0 0.0
    %172 = vmatpush1.msra.mxu0 0.0
    %173 = vmatprep.subr.mxu0 0.0
    %174 = vmatpush1.msra.mxu0 0.0
    %175 = vmatprep.subr.mxu0 0.0
    %176 = vmatpush1.msra.mxu0 0.0
    %177 = vmatprep.subr.mxu0 0.0
    %178 = vmatpush1.msra.mxu0 0.0
    %179 = vmatprep.subr.mxu0 0.0
    %180 = vmatpush1.msra.mxu0 0.0
    %181 = vmatprep.subr.mxu0 0.0
    %182 = vmatpush1.msra.mxu0 0.0
    %183 = vmatprep.subr.mxu0 0.0
    %184 = vmatpush1.msra.mxu0 0.0
    %185 = vmatprep.subr.mxu0 0.0
    %186 = vmatpush1.msra.mxu0 0.0
    %187 = vmatprep.subr.mxu0 0.0
    %188 = vmatpush1.msra.mxu0 0.0
    %189 = vmatprep.subr.mxu0 0.0
    %190 = vmatpush1.msra.mxu0 0.0
    %191 = vmatprep.subr.mxu0 0.0
    %192 = vmatpush1.msra.mxu0 0.0
    %193 = vmatprep.subr.mxu0 0.0
    %194 = vmatpush1.msra.mxu0 0.0
    %195 = vmatprep.subr.mxu0 0.0
    %196 = vmatpush1.msra.mxu0 0.0
    %197 = vmatprep.subr.mxu0 0.0
    %198 = vmatpush1.msra.mxu0 0.0
    %199 = vmatprep.subr.mxu0 0.0
    %200 = vmatpush1.msra.mxu0 0.0
    %201 = vmatprep.subr.mxu0 0.0
    %202 = vmatpush1.msra.mxu0 0.0
    %203 = vmatprep.subr.mxu0 0.0
    %204 = vmatpush1.msra.mxu0 0.0
    %205 = vmatprep.mubr.f32.mxu0 0.0
    %206 = vmatmul.mubr.f32.gmra.mrb[0].mxu0 %v139
    %v207 = vpop.f32.mrb[0].mxu0
    %v208 = vadd.f32 0.0, %v207
    %v209 = vpop.f32.mrb[0].mxu0
    %210 = vdwg.mxu0
    %v211 = vmul.f32 %v208, 0.17677669
    %v212 = vld [vmem:[#allocation11] sm:$0x3]
    %v213 = vld [vmem:[#allocation11 + $0x2] sm:$0x3]
    %v214 = vld [vmem:[#allocation11 + $0x4] sm:$0x3]
    %v215 = vld [vmem:[#allocation11 + $0x6] sm:$0x3]
    %v216 = vld [vmem:[#allocation11 + $0x8] sm:$0x3]
    %v217 = vld [vmem:[#allocation11 + $0xa] sm:$0x3]
    %v218 = vld [vmem:[#allocation11 + $0xc] sm:$0x3]
    %v219 = vld [vmem:[#allocation11 + $0xe] sm:$0x3]
    %v220 = vld [vmem:[#allocation3] sm:$0x1]
    %vm221 = vcmask 15360
    %v222 = vsel %vm221, %v211, -inf
    %v223 = vrot.slane %v222, 4
    %v224 = vmax.f32 %v222, %v223
    %v225 = vrot.slane %v224, 2
    %v226 = vmax.f32 %v224, %v225
    %v227 = vrot.slane %v226, 1
    %v228 = vmax.f32 %v226, %v227
    %v229 = vmax.f32 %v220, %v228
    %v230 = vsub.f32 %v220, %v229
    %v231 = vmul.f32 %v230, 1.442695
    %v232 = vpow.pop %v231
    %v234 = vlaneseq
    %v235 = vshrl.u32 %v234, 7
    %v236 = vsub.s32 0, %v235
    %v237 = vrot.slane %v229, %v236
    %v239 = vsub.f32 %v211, %v237
    %v240 = vmul.f32 %v239, 1.442695
    %v241 = vpow.pop %v240
    %v242 = vld [vmem:[#allocation4] sm:$0x1]
    %v243 = vmul.f32 %v232, %v242
    %v244 = vsel %vm221, %v241, 0.0
    %v245 = vrot.slane %v244, 4
    %v246 = vadd.f32 %v244, %v245
    %v247 = vrot.slane %v246, 2
    %v248 = vadd.f32 %v246, %v247
    %v249 = vrot.slane %v248, 1
    %v250 = vadd.f32 %v248, %v249
    %v251 = vadd.f32 %v243, %v250
    %vm252 = vcmask 8192
    %253 = vst.msk [vmem:[#allocation4] sm:$0x1] %vm252, %v251
    %254 = vxpose.xlu0.b32.start [1/16] %v232, 128
    %255 = vxpose.xlu0.b32.cont [2/16] 0.0, 128
    %256 = vxpose.xlu0.b32.cont [3/16] 0.0, 128
    %257 = vxpose.xlu0.b32.cont [4/16] 0.0, 128
    %258 = vxpose.xlu0.b32.cont [5/16] 0.0, 128
    %259 = vxpose.xlu0.b32.cont [6/16] 0.0, 128
    %260 = vxpose.xlu0.b32.cont [7/16] 0.0, 128
    %261 = vxpose.xlu0.b32.cont [8/16] 0.0, 128
    %262 = vxpose.xlu0.b32.cont [9/16] 0.0, 128
    %263 = vxpose.xlu0.b32.cont [10/16] 0.0, 128
    %264 = vxpose.xlu0.b32.cont [11/16] 0.0, 128
    %265 = vxpose.xlu0.b32.cont [12/16] 0.0, 128
    %266 = vxpose.xlu0.b32.cont [13/16] 0.0, 128
    %267 = vxpose.xlu0.b32.cont [14/16] 0.0, 128
    %268 = vxpose.xlu0.b32.cont [15/16] 0.0, 128
    %269 = vxpose.xlu0.b32.end [16/16] 0.0, 128
    %v270 = vpop.trf.xlu0
    %v271 = vpop.trf.xlu0
    %v272 = vpop.trf.xlu0
    %v273 = vpop.trf.xlu0
    %v274 = vpop.trf.xlu0
    %v275 = vpop.trf.xlu0
    %v276 = vpop.trf.xlu0
    %v277 = vpop.trf.xlu0
    %v278 = vpop.trf.xlu0
    %v279 = vpop.trf.xlu0
    %v280 = vpop.trf.xlu0
    %v281 = vpop.trf.xlu0
    %v282 = vpop.trf.xlu0
    %v283 = vpop.trf.xlu0
    %v284 = vpop.trf.xlu0
    %v285 = vpop.trf.xlu0
    %v286 = vld [vmem:[#allocation5] sm:$0x3]
    %288 = vset.pattern.permute.xlu0 0
    %289 = vperm.xlu0 %288, %v270
    %v290 = vpop.permute.xlu0 %289
    %v292 = vmul.f32 %v290, %v286
    %v293 = vlaneseq
    %v294 = vshrl.u32 %v293, 7
    %v295 = vsub.s32 0, %v294
    %v296 = vrot.slane %v241, %v295
    %298 = vbcast.lane.b32.xlu0 %v296, 256
    %v299 = vpop.permute.xlu0 %298
    %v300 = vlaneseq
    %v301 = vshrl.u32 %v300, 7
    %v302 = vsub.s32 1, %v301
    %v303 = vrot.slane %v241, %v302
    %305 = vbcast.lane.b32.xlu0 %v303, 256
    %v306 = vpop.permute.xlu0 %305
    %v307 = vlaneseq
    %v308 = vshrl.u32 %v307, 7
    %v309 = vsub.s32 2, %v308
    %v310 = vrot.slane %v241, %v309
    %312 = vbcast.lane.b32.xlu0 %v310, 256
    %v313 = vpop.permute.xlu0 %312
    %v314 = vlaneseq
    %v315 = vshrl.u32 %v314, 7
    %v316 = vsub.s32 3, %v315
    %v317 = vrot.slane %v241, %v316
    %319 = vbcast.lane.b32.xlu0 %v317, 256
    %v320 = vpop.permute.xlu0 %319
    %v321 = vlaneseq
    %v322 = vshrl.u32 %v321, 7
    %v323 = vsub.s32 4, %v322
    %v324 = vrot.slane %v241, %v323
    %326 = vbcast.lane.b32.xlu0 %v324, 256
    %v327 = vpop.permute.xlu0 %326
    %v328 = vlaneseq
    %v329 = vshrl.u32 %v328, 7
    %v330 = vsub.s32 5, %v329
    %v331 = vrot.slane %v241, %v330
    %333 = vbcast.lane.b32.xlu0 %v331, 256
    %v334 = vpop.permute.xlu0 %333
    %v335 = vlaneseq
    %v336 = vshrl.u32 %v335, 7
    %v337 = vsub.s32 6, %v336
    %v338 = vrot.slane %v241, %v337
    %340 = vbcast.lane.b32.xlu0 %v338, 256
    %v341 = vpop.permute.xlu0 %340
    %v342 = vlaneseq
    %v343 = vshrl.u32 %v342, 7
    %v344 = vsub.s32 7, %v343
    %v345 = vrot.slane %v241, %v344
    %347 = vbcast.lane.b32.xlu0 %v345, 256
    %v348 = vpop.permute.xlu0 %347
    %v349 = vmul.f32 %v299, %v212
    %v350 = vmul.f32 %v306, %v213
    %v351 = vmul.f32 %v313, %v214
    %v352 = vmul.f32 %v320, %v215
    %v353 = vmul.f32 %v327, %v216
    %v354 = vmul.f32 %v334, %v217
    %v355 = vmul.f32 %v341, %v218
    %v356 = vmul.f32 %v348, %v219
    %vm357 = vcmask 254976
    %v358 = vsel %vm357, %v349, 0.0
    %v359 = vsel %vm357, %v350, 0.0
    %v360 = vadd.f32 %v358, %v359
    %v361 = vsel %vm357, %v351, 0.0
    %v362 = vadd.f32 %v360, %v361
    %v363 = vsel %vm357, %v352, 0.0
    %v364 = vadd.f32 %v362, %v363
    %v365 = vsel %vm357, %v353, 0.0
    %v366 = vadd.f32 %v364, %v365
    %v367 = vsel %vm357, %v354, 0.0
    %v368 = vadd.f32 %v366, %v367
    %v369 = vsel %vm357, %v355, 0.0
    %v370 = vadd.f32 %v368, %v369
    %v371 = vsel %vm357, %v356, 0.0
    %v372 = vadd.f32 %v370, %v371
    %v373 = vadd.f32 %v292, %v372
    %374 = vst.msk [vmem:[#allocation5] sm:$0x3] %vm357, %v373
    %375 = vst.msk [vmem:[#allocation3] sm:$0x1] %vm252, %v229
    %376 = vxpose.xlu0.b32.start [1/16] %v241, 128
    %377 = vxpose.xlu0.b32.cont [2/16] 0.0, 128
    %378 = vxpose.xlu0.b32.cont [3/16] 0.0, 128
    %379 = vxpose.xlu0.b32.cont [4/16] 0.0, 128
    %380 = vxpose.xlu0.b32.cont [5/16] 0.0, 128
    %381 = vxpose.xlu0.b32.cont [6/16] 0.0, 128
    %382 = vxpose.xlu0.b32.cont [7/16] 0.0, 128
    %383 = vxpose.xlu0.b32.cont [8/16] 0.0, 128
    %384 = vxpose.xlu0.b32.cont [9/16] 0.0, 128
    %385 = vxpose.xlu0.b32.cont [10/16] 0.0, 128
    %386 = vxpose.xlu0.b32.cont [11/16] 0.0, 128
    %387 = vxpose.xlu0.b32.cont [12/16] 0.0, 128
    %388 = vxpose.xlu0.b32.cont [13/16] 0.0, 128
    %389 = vxpose.xlu0.b32.cont [14/16] 0.0, 128
    %390 = vxpose.xlu0.b32.cont [15/16] 0.0, 128
    %391 = vxpose.xlu0.b32.end [16/16] 0.0, 128
    %v392 = vpop.trf.xlu0
    %v393 = vpop.trf.xlu0
    %v394 = vpop.trf.xlu0
    %v395 = vpop.trf.xlu0
    %v396 = vpop.trf.xlu0
    %v397 = vpop.trf.xlu0
    %v398 = vpop.trf.xlu0
    %v399 = vpop.trf.xlu0
    %v400 = vpop.trf.xlu0
    %v401 = vpop.trf.xlu0
    %v402 = vpop.trf.xlu0
    %v403 = vpop.trf.xlu0
    %v404 = vpop.trf.xlu0
    %v405 = vpop.trf.xlu0
    %v406 = vpop.trf.xlu0
    %v407 = vpop.trf.xlu0
    %vm408 = vcmask 58368
    %409 = vst.msk [vmem:[#allocation12] sm:$0x3] %vm408, %v392
    %v410 = vlaneseq
    %v411 = vand.u32 %v410, 127
    %v412 = vstv 0
    %vm413 = vcmp.eq.s32.totalorder %v411, %v412
    %414 = vxpose.xlu0.b32.start [1/16] %v229, 128
    %415 = vxpose.xlu0.b32.cont [2/16] 0.0, 128
    %416 = vxpose.xlu0.b32.cont [3/16] 0.0, 128
    %417 = vxpose.xlu0.b32.cont [4/16] 0.0, 128
    %418 = vxpose.xlu0.b32.cont [5/16] 0.0, 128
    %419 = vxpose.xlu0.b32.cont [6/16] 0.0, 128
    %420 = vxpose.xlu0.b32.cont [7/16] 0.0, 128
    %421 = vxpose.xlu0.b32.cont [8/16] 0.0, 128
    %422 = vxpose.xlu0.b32.cont [9/16] 0.0, 128
    %423 = vxpose.xlu0.b32.cont [10/16] 0.0, 128
    %424 = vxpose.xlu0.b32.cont [11/16] 0.0, 128
    %425 = vxpose.xlu0.b32.cont [12/16] 0.0, 128
    %426 = vxpose.xlu0.b32.cont [13/16] 0.0, 128
    %427 = vxpose.xlu0.b32.cont [14/16] 0.0, 128
    %428 = vxpose.xlu0.b32.cont [15/16] 0.0, 128
    %429 = vxpose.xlu0.b32.end [16/16] 0.0, 128
    %v430 = vpop.trf.xlu0
    %v431 = vpop.trf.xlu0
    %v432 = vpop.trf.xlu0
    %v433 = vpop.trf.xlu0
    %v434 = vpop.trf.xlu0
    %v435 = vpop.trf.xlu0
    %v436 = vpop.trf.xlu0
    %v437 = vpop.trf.xlu0
    %v438 = vpop.trf.xlu0
    %v439 = vpop.trf.xlu0
    %v440 = vpop.trf.xlu0
    %v441 = vpop.trf.xlu0
    %v442 = vpop.trf.xlu0
    %v443 = vpop.trf.xlu0
    %v444 = vpop.trf.xlu0
    %v445 = vpop.trf.xlu0
    %v446 = vld [vmem:[%s4] sm:$0x3]
    %v447 = vsel %vm413, %v430, %v446
    %vm448 = vcmask 1024
    %449 = vst.msk [vmem:[%s4] sm:$0x3] %vm448, %v447
    // Predicated region
    $region30: #{tpu_custom_call.1} parent=1 // pred_check
      %p450 = pneg %p57
    $region31: #{tpu_custom_call.1} parent=1 // pred_check_branch
      %452 = sbr.rel (%p450) target = $region33
    $region32: #{tpu_custom_call.1} parent=1 // pred_region
      %v453 = vld [vmem:[#allocation4] sm:$0x1]
      %v454 = vrcp.pop %v453
      %v455 = vmul.f32 1.0, %v454
      %456 = vxpose.xlu0.b32.start [1/16] %v455, 128
      %457 = vxpose.xlu0.b32.cont [2/16] 0.0, 128
      %458 = vxpose.xlu0.b32.cont [3/16] 0.0, 128
      %459 = vxpose.xlu0.b32.cont [4/16] 0.0, 128
      %460 = vxpose.xlu0.b32.cont [5/16] 0.0, 128
      %461 = vxpose.xlu0.b32.cont [6/16] 0.0, 128
      %462 = vxpose.xlu0.b32.cont [7/16] 0.0, 128
      %463 = vxpose.xlu0.b32.cont [8/16] 0.0, 128
      %464 = vxpose.xlu0.b32.cont [9/16] 0.0, 128
      %465 = vxpose.xlu0.b32.cont [10/16] 0.0, 128
      %466 = vxpose.xlu0.b32.cont [11/16] 0.0, 128
      %467 = vxpose.xlu0.b32.cont [12/16] 0.0, 128
      %468 = vxpose.xlu0.b32.cont [13/16] 0.0, 128
      %469 = vxpose.xlu0.b32.cont [14/16] 0.0, 128
      %470 = vxpose.xlu0.b32.cont [15/16] 0.0, 128
      %471 = vxpose.xlu0.b32.end [16/16] 0.0, 128
      %v472 = vpop.trf.xlu0
      %v473 = vpop.trf.xlu0
      %v474 = vpop.trf.xlu0
      %v475 = vpop.trf.xlu0
      %v476 = vpop.trf.xlu0
      %v477 = vpop.trf.xlu0
      %v478 = vpop.trf.xlu0
      %v479 = vpop.trf.xlu0
      %v480 = vpop.trf.xlu0
      %v481 = vpop.trf.xlu0
      %v482 = vpop.trf.xlu0
      %v483 = vpop.trf.xlu0
      %v484 = vpop.trf.xlu0
      %v485 = vpop.trf.xlu0
      %v486 = vpop.trf.xlu0
      %v487 = vpop.trf.xlu0
      %v488 = vld [vmem:[#allocation5] sm:$0x3]
      %490 = vset.pattern.permute.xlu0 0
      %491 = vperm.xlu0 %490, %v472
      %v492 = vpop.permute.xlu0 %491
      %v494 = vmul.f32 %v488, %v492
      %495 = vst.msk [vmem:[#allocation13] sm:$0x3] %vm357, %v494
      %v496 = vld [vmem:[#allocation4] sm:$0x1]
      %497 = vxpose.xlu0.b32.start [1/16] %v496, 128
      %498 = vxpose.xlu0.b32.cont [2/16] 0.0, 128
      %499 = vxpose.xlu0.b32.cont [3/16] 0.0, 128
      %500 = vxpose.xlu0.b32.cont [4/16] 0.0, 128
      %501 = vxpose.xlu0.b32.cont [5/16] 0.0, 128
      %502 = vxpose.xlu0.b32.cont [6/16] 0.0, 128
      %503 = vxpose.xlu0.b32.cont [7/16] 0.0, 128
      %504 = vxpose.xlu0.b32.cont [8/16] 0.0, 128
      %505 = vxpose.xlu0.b32.cont [9/16] 0.0, 128
      %506 = vxpose.xlu0.b32.cont [10/16] 0.0, 128
      %507 = vxpose.xlu0.b32.cont [11/16] 0.0, 128
      %508 = vxpose.xlu0.b32.cont [12/16] 0.0, 128
      %509 = vxpose.xlu0.b32.cont [13/16] 0.0, 128
      %510 = vxpose.xlu0.b32.cont [14/16] 0.0, 128
      %511 = vxpose.xlu0.b32.cont [15/16] 0.0, 128
      %512 = vxpose.xlu0.b32.end [16/16] 0.0, 128
      %v513 = vpop.trf.xlu0
      %v514 = vpop.trf.xlu0
      %v515 = vpop.trf.xlu0
      %v516 = vpop.trf.xlu0
      %v517 = vpop.trf.xlu0
      %v518 = vpop.trf.xlu0
      %v519 = vpop.trf.xlu0
      %v520 = vpop.trf.xlu0
      %v521 = vpop.trf.xlu0
      %v522 = vpop.trf.xlu0
      %v523 = vpop.trf.xlu0
      %v524 = vpop.trf.xlu0
      %v525 = vpop.trf.xlu0
      %v526 = vpop.trf.xlu0
      %v527 = vpop.trf.xlu0
      %v528 = vpop.trf.xlu0
      %529 = vst.msk [vmem:[%s5] sm:$0x3] %vm448, %v513
    $region33: #{tpu_custom_call.1} parent=1 // pred_fallthru
      _
    // Predicated region
    $region34: #{tpu_custom_call.1} parent=1 // pred_check
      _
    $region35: #{tpu_custom_call.1} parent=1 // pred_check_branch
      %531 = sbr.rel (0) target = $region37
    $region36: #{tpu_custom_call.1} parent=1 // pred_region
      %s533 = ssub.s32 32, 32
      %534 = vsyncadd [#allocation8], %s533
      %s536 = sshll.u32 [#allocation12], 4
      %s537 = int_to_ptr.vmem [resolvable:$true] %s536
      %539 = dma.vmem_to_hbm [thread:$0]  %s537, 32, %s3, [#allocation8]
    $region37: #{tpu_custom_call.1} parent=1 // pred_fallthru
      _
    // Predicated region
    $region38: #{tpu_custom_call.1} parent=1 // pred_check
      _
    $region39: #{tpu_custom_call.1} parent=1 // pred_check_branch
      %541 = sbr.rel (0) target = $region41
    $region40: #{tpu_custom_call.1} parent=1 // pred_region
      _
    $region41: #{tpu_custom_call.1} parent=1 // pred_fallthru
      _
    // Predicated region
    $region42: #{tpu_custom_call.1} parent=1 // pred_check
      _
    $region43: #{tpu_custom_call.1} parent=1 // pred_check_branch
      %543 = sbr.rel (0) target = $region45
    $region44: #{tpu_custom_call.1} parent=1 // pred_region
      _
    $region45: #{tpu_custom_call.1} parent=1 // pred_fallthru
      _
    // Predicated region
    $region46: #{tpu_custom_call.1} parent=1 // pred_check
      _
    $region47: #{tpu_custom_call.1} parent=1 // pred_check_branch
      %545 = sbr.rel (0) target = $region49
    $region48: #{tpu_custom_call.1} parent=1 // pred_region
      %s547 = ssub.s32 32, 32
      %548 = vsyncadd [#allocation14], %s547
      %s550 = sshll.u32 [#allocation13], 4
      %s551 = int_to_ptr.vmem [resolvable:$true] %s550
      %553 = dma.vmem_to_hbm [thread:$0]  %s551, 32, %s6, [#allocation14]
    $region49: #{tpu_custom_call.1} parent=1 // pred_fallthru
      _
    // Predicated region
    $region50: #{tpu_custom_call.1} parent=1 // pred_check
      _
    $region51: #{tpu_custom_call.1} parent=1 // pred_check_branch
      %555 = sbr.rel (0) target = $region53
    $region52: #{tpu_custom_call.1} parent=1 // pred_region
      %556 = dma.done [#allocation8], 32
    $region53: #{tpu_custom_call.1} parent=1 // pred_fallthru
      _
    // Predicated region
    $region54: #{tpu_custom_call.1} parent=1 // pred_check
      _
    $region55: #{tpu_custom_call.1} parent=1 // pred_check_branch
      %558 = sbr.rel (0) target = $region57
    $region56: #{tpu_custom_call.1} parent=1 // pred_region
      _
    $region57: #{tpu_custom_call.1} parent=1 // pred_fallthru
      _
    // Predicated region
    $region58: #{tpu_custom_call.1} parent=1 // pred_check
      _
    $region59: #{tpu_custom_call.1} parent=1 // pred_check_branch
      %560 = sbr.rel (0) target = $region61
    $region60: #{tpu_custom_call.1} parent=1 // pred_region
      _
    $region61: #{tpu_custom_call.1} parent=1 // pred_fallthru
      _
    // Predicated region
    $region62: #{tpu_custom_call.1} parent=1 // pred_check
      _
    $region63: #{tpu_custom_call.1} parent=1 // pred_check_branch
      %562 = sbr.rel (0) target = $region65
    $region64: #{tpu_custom_call.1} parent=1 // pred_region
      %563 = dma.done [#allocation14], 32
    $region65: #{tpu_custom_call.1} parent=1 // pred_fallthru
      _
    %564 = vsyncpa [#allocation7], 1
    %565 = vsyncpa [#allocation10], 1
    %566 = vsyncpa [#allocation8], 1
    %567 = vsyncpa [#allocation14], 1

</llo_original>
